<compile_context>
chip_gen: v5e
topology: v5e:2x2
jax: 0.10.0
libtpu: 0.0.40
codegen_flags: <defaults>
</compile_context>

<pallas_src>
import functools

import jax
import jax.numpy as jnp
from jax.experimental import pallas as pl
from jax.experimental.pallas import tpu as pltpu


def _focal_loss_kernel(logits_ref, labels_ref, loss_ref, *,
                       alpha, gamma, n_valid, row_tile, need_mask):
    x = logits_ref[...]
    y = labels_ref[...]
    if x.dtype != jnp.float32:
        x = x.astype(jnp.float32)
    if y.dtype != jnp.float32:
        y = y.astype(jnp.float32)

    if need_mask:
        # Zero out rows beyond the true row count (last partial tile).
        row0 = pl.program_id(0) * row_tile
        rid = row0 + jax.lax.broadcasted_iota(jnp.int32, (row_tile, 1), 0)
        valid = rid < n_valid                      # (RT, 1)
        x = jnp.where(valid, x, 0.0)
        y = jnp.where(valid, y, 0.0)

    # Numerically stable log-softmax (== log(softmax(x)) in the reference module).
    m = jnp.max(x, axis=-1, keepdims=True)
    shifted = x - m
    denom = jnp.sum(jnp.exp(shifted), axis=-1, keepdims=True)
    log_p = shifted - jnp.log(denom)

    # ce = -(labels * log softmax).sum(-1); pt = exp(-ce)
    ce = -jnp.sum(y * log_p, axis=-1, keepdims=True)     # (RT, 1)
    pt = jnp.exp(-ce)
    omp = jnp.maximum(1.0 - pt, 0.0)                     # guard tiny fp negatives

    # (1 - pt) ** gamma : use pure-VPU repeated multiply for small integer gamma.
    g = float(gamma)
    if g == round(g) and 0 <= int(round(g)) <= 8:
        k = int(round(g))
        if k == 0:
            w = jnp.ones_like(omp)
        else:
            w = omp
            for _ in range(k - 1):
                w = w * omp
    else:
        w = omp ** g   # non-integer gamma falls back to pow (EUP)

    loss_ref[...] = alpha * w * ce                       # (RT, 1) f32 per-row loss


def _auto_row_tile(n, d, logits_dtype, labels_dtype):
    """Pick the largest row tile that keeps double-buffered blocks in scoped VMEM."""
    sz_l = jnp.dtype(logits_dtype).itemsize
    sz_y = jnp.dtype(labels_dtype).itemsize
    # Sublane quantum from the narrowest streamed dtype (f32 -> 8, bf16 -> 16, int8 -> 32).
    sub = 32 // min(sz_l, sz_y)

    budget = 20 * 1024 * 1024                 # block budget; safe on v5e/v6e/v7x
    per_row = 2 * d * (sz_l + sz_y) + 2 * 4   # 2 pipeline bufs x inputs + f32 output row
    rt = int(budget // per_row)
    rt = max(sub, min(rt, 1024))
    rt -= rt % sub
    # Don't make tiles bigger than the (sublane-rounded) problem.
    n_round = ((n + sub - 1) // sub) * sub
    rt = max(sub, min(rt, n_round))
    return rt, sub


def focal_loss(logits, labels, *, alpha=0.25, gamma=2.0, epsilon=1e-09,
               reduction="mean", row_tile=None):
    """Pallas TPU implementation of FocalLoss.forward.

    logits, labels: (N, num_answer). Supports reduction in {'mean', 'sum', 'none'}.
    `epsilon` is accepted for API parity but (like the PyTorch forward) unused.
    """
    del epsilon  # not used in the reference forward pass
    assert logits.shape == labels.shape and logits.ndim == 2
    n, d = logits.shape

    auto_rt, sub = _auto_row_tile(n, d, logits.dtype, labels.dtype)
    if row_tile is None:
        row_tile = auto_rt
    assert row_tile % sub == 0, f"row_tile must be a multiple of {sub} for these dtypes"

    num_tiles = pl.cdiv(n, row_tile)
    n_pad = num_tiles * row_tile
    need_mask = (n_pad != n)

    kernel = functools.partial(
        _focal_loss_kernel,
        alpha=float(alpha), gamma=float(gamma),
        n_valid=n, row_tile=row_tile, need_mask=need_mask)

    per_row = pl.pallas_call(
        kernel,
        out_shape=jax.ShapeDtypeStruct((n_pad, 1), jnp.float32),
        grid_spec=pltpu.PrefetchScalarGridSpec(
            num_scalar_prefetch=0,
            grid=(num_tiles,),
            in_specs=[
                pl.BlockSpec((row_tile, d), lambda i: (i, 0)),
                pl.BlockSpec((row_tile, d), lambda i: (i, 0)),
            ],
            out_specs=pl.BlockSpec((row_tile, 1), lambda i: (i, 0)),
        ),
        compiler_params=pltpu.CompilerParams(
            dimension_semantics=("parallel",),      # independent tiles -> megacore on v7x
            vmem_limit_bytes=32 * 1024 * 1024,      # raise v5e's 16 MiB default; < v7x 64 MiB
        ),
    )(logits, labels)

    per_row = per_row[:n, 0]
    if reduction == "mean":
        return jnp.mean(per_row)          # divides by the TRUE row count
    elif reduction == "sum":
        return jnp.sum(per_row)
    else:
        return per_row                    # 'none' / anything else: unreduced, like PyTorch


def focal_loss_ref(logits, labels, *, alpha=0.25, gamma=2.0, reduction="mean"):
    """Pure-JAX reference mirroring the PyTorch module."""
    p = jax.nn.softmax(logits.astype(jnp.float32), axis=-1)
    ce = -jnp.sum(labels.astype(jnp.float32) * jnp.log(p), axis=-1)
    pt = jnp.exp(-ce)
    loss = alpha * (1.0 - pt) ** gamma * ce
    if reduction == "mean":
        return jnp.mean(loss)
    if reduction == "sum":
        return jnp.sum(loss)
    return loss


if __name__ == "__main__":
    key = jax.random.PRNGKey(0)

    # ---- Test 1: f32, exact tiling (N multiple of 8) --------------------------
    k1, k2, key = jax.random.split(key, 3)
    N, NUM_ANSWER = 8, 32
    logits = jax.random.normal(k1, (N, NUM_ANSWER), dtype=jnp.float32)
    labels = jax.nn.softmax(
        jax.random.normal(k2, (N, NUM_ANSWER), dtype=jnp.float32) * 2.0, axis=-1)

    out = focal_loss(logits, labels)
    jax.block_until_ready(out)
    ref = focal_loss_ref(logits, labels)
    assert jnp.allclose(out, ref, rtol=1e-5, atol=1e-6), (out, ref)

    # ---- Test 2: f32, ragged N (exercises the in-kernel partial-tile mask) ----
    k1, k2, key = jax.random.split(key, 3)
    N2 = 13
    logits2 = jax.random.normal(k1, (N2, NUM_ANSWER), dtype=jnp.float32)
    labels2 = jax.nn.softmax(
        jax.random.normal(k2, (N2, NUM_ANSWER), dtype=jnp.float32) * 2.0, axis=-1)

    out2 = focal_loss(logits2, labels2)
    jax.block_until_ready(out2)
    ref2 = focal_loss_ref(logits2, labels2)
    assert jnp.allclose(out2, ref2, rtol=1e-5, atol=1e-6), (out2, ref2)

    out2s = focal_loss(logits2, labels2, reduction="sum")
    ref2s = focal_loss_ref(logits2, labels2, reduction="sum")
    jax.block_until_ready(out2s)
    assert jnp.allclose(out2s, ref2s, rtol=1e-5, atol=1e-6), (out2s, ref2s)

    # ---- Test 3: bf16 streaming (half HBM bytes; math stays f32 in-kernel) ----
    k1, k2, key = jax.random.split(key, 3)
    N3, D3 = 64, 256
    logits3 = jax.random.normal(k1, (N3, D3), dtype=jnp.float32).astype(jnp.bfloat16)
    labels3 = jax.nn.softmax(
        jax.random.normal(k2, (N3, D3), dtype=jnp.float32) * 2.0, axis=-1
    ).astype(jnp.bfloat16)

    out3 = focal_loss(logits3, labels3)
    jax.block_until_ready(out3)
    ref3 = focal_loss_ref(logits3, labels3)   # ref also upcasts the same bf16 inputs
    assert jnp.allclose(out3, ref3, rtol=1e-4, atol=1e-5), (out3, ref3)

    print("KERNEL_OK")
</pallas_src>

<mosaic_0001>
module attributes {stable_mosaic.version = 11 : i64} {
  func.func @_focal_loss_kernel(%arg0: i32, %arg1: memref<8x32xf32, #tpu.memory_space<vmem>>, %arg2: memref<8x32xf32, #tpu.memory_space<vmem>>, %arg3: memref<8x1xf32, #tpu.memory_space<vmem>>) attributes {dimension_semantics = [#tpu.dimension_semantics<parallel>], iteration_bounds = array<i64: 1>, scalar_prefetch = 0 : i64, scratch_operands = 0 : i64, tpu.core_type = #tpu.core_type<tc>, window_params = [{transform_indices = @transform_0, window_bounds = array<i64: 8, 32>}, {transform_indices = @transform_1, window_bounds = array<i64: 8, 32>}, {transform_indices = @transform_2, window_bounds = array<i64: 8, 1>}]} {
    %c0 = arith.constant 0 : index
    %c0_0 = arith.constant 0 : index
    %0 = vector.load %arg1[%c0, %c0_0] : memref<8x32xf32, #tpu.memory_space<vmem>>, vector<8x32xf32>
    %c0_1 = arith.constant 0 : index
    %c0_2 = arith.constant 0 : index
    %1 = vector.load %arg2[%c0_1, %c0_2] : memref<8x32xf32, #tpu.memory_space<vmem>>, vector<8x32xf32>
    %cst = arith.constant dense<0xFF800000> : vector<8xf32>
    %2 = vector.multi_reduction <maximumf>, %0, %cst [1] : vector<8x32xf32> to vector<8xf32>
    %3 = vector.shape_cast %2 : vector<8xf32> to vector<8x1xf32>
    %4 = vector.broadcast %3 : vector<8x1xf32> to vector<8x32xf32>
    %5 = arith.subf %0, %4 : vector<8x32xf32>
    %6 = math.exp %5 : vector<8x32xf32>
    %cst_3 = arith.constant dense<0.000000e+00> : vector<8xf32>
    %7 = vector.multi_reduction <add>, %6, %cst_3 [1] : vector<8x32xf32> to vector<8xf32>
    %8 = vector.shape_cast %7 : vector<8xf32> to vector<8x1xf32>
    %9 = math.log %8 : vector<8x1xf32>
    %10 = vector.broadcast %9 : vector<8x1xf32> to vector<8x32xf32>
    %11 = arith.subf %5, %10 : vector<8x32xf32>
    %12 = arith.mulf %1, %11 : vector<8x32xf32>
    %cst_4 = arith.constant dense<0.000000e+00> : vector<8xf32>
    %13 = vector.multi_reduction <add>, %12, %cst_4 [1] : vector<8x32xf32> to vector<8xf32>
    %14 = vector.shape_cast %13 : vector<8xf32> to vector<8x1xf32>
    %cst_5 = arith.constant 0.000000e+00 : f32
    %15 = vector.broadcast %cst_5 : f32 to vector<8x1xf32>
    %16 = arith.subf %15, %14 : vector<8x1xf32>
    %cst_6 = arith.constant 0.000000e+00 : f32
    %17 = vector.broadcast %cst_6 : f32 to vector<8x1xf32>
    %18 = arith.subf %17, %16 : vector<8x1xf32>
    %19 = math.exp %18 : vector<8x1xf32>
    %cst_7 = arith.constant 1.000000e+00 : f32
    %20 = vector.broadcast %cst_7 : f32 to vector<8x1xf32>
    %21 = arith.subf %20, %19 : vector<8x1xf32>
    %cst_8 = arith.constant 0.000000e+00 : f32
    %22 = vector.broadcast %cst_8 : f32 to vector<8x1xf32>
    %23 = arith.maximumf %21, %22 : vector<8x1xf32>
    %24 = arith.mulf %23, %23 : vector<8x1xf32>
    %cst_9 = arith.constant 2.500000e-01 : f32
    %25 = vector.broadcast %cst_9 : f32 to vector<8x1xf32>
    %26 = arith.mulf %25, %24 : vector<8x1xf32>
    %27 = arith.mulf %26, %16 : vector<8x1xf32>
    %c0_10 = arith.constant 0 : index
    %c0_11 = arith.constant 0 : index
    %28 = vector.load %arg3[%c0_10, %c0_11] : memref<8x1xf32, #tpu.memory_space<vmem>>, vector<8x1xf32>
    tpu.vector_store %arg3[%c0_10, %c0_11], %27 {strides = array<i32>} : memref<8x1xf32, #tpu.memory_space<vmem>>, vector<8x1xf32>,
    return
  }
  func.func @transform_0(%arg0: i32) -> (i32, i32) {
    %c0_i32 = arith.constant 0 : i32
    %c0_i32_0 = arith.constant 0 : i32
    return %arg0, %c0_i32 : i32, i32
  }
  func.func @transform_1(%arg0: i32) -> (i32, i32) {
    %c0_i32 = arith.constant 0 : i32
    %c0_i32_0 = arith.constant 0 : i32
    return %arg0, %c0_i32 : i32, i32
  }
  func.func @transform_2(%arg0: i32) -> (i32, i32) {
    %c0_i32 = arith.constant 0 : i32
    %c0_i32_0 = arith.constant 0 : i32
    return %arg0, %c0_i32 : i32, i32
  }
}

</mosaic_0001>

<llo_original>
// kernel: tpu_custom_call.1
$region0: #{tpu_custom_call.1}
  #allocation0 [shape = 'u32[]', space=smem, size = 0x4, offset = 0x4, fixed_abs, tag = 'smem constant byte address 0x4 - core index']
  #allocation1 [shape = 'u32[72,128]{1,0:T(1,128)}', space=vmem, size = 0x9000, scoped, tag = 'internal scratch']
  %s0 = inlined_call_operand.hbm [shape: f32[8,32], index: 0, kind: input, shape index: {}]
  %s1 = inlined_call_operand.hbm [shape: f32[8,32], index: 1, kind: input, shape index: {}]
  %s2 = inlined_call_operand.vmem [shape: f32[8,1], index: 2, kind: output, shape index: {}]
  %s3 = sld [smem:[#allocation0]]
  $region26: #{tpu_custom_call.1} parent=0
    _
  %s5 = ssub.s32 1, %s3
  %s6 = scalar_select 0, %s5, %s3
  $region1: #{tpu_custom_call.1} parent=0
    #allocation2 [shape = 'u8[4096]{0}', space=vmem, size = 0x1000, scoped, tag = 'input window, operand 0, single buffered']
    #allocation3 [shape = 's32[1]{0}', space=sflag, size = 0x4, scoped, tag = 'scoped memory for tpu_custom_call.1']
    #allocation4 [shape = 'u8[4096]{0}', space=vmem, size = 0x1000, scoped, tag = 'input window, operand 1, single buffered']
    #allocation5 [shape = 's32[1]{0}', space=sflag, size = 0x4, scoped, tag = 'scoped memory for tpu_custom_call.1']
    %7 = vsyncpa [#allocation3], 0
    %8 = vsyncpa [#allocation5], 0
    // Predicated region
    $region2: #{tpu_custom_call.1} parent=1 // pred_check
      _
    $region3: #{tpu_custom_call.1} parent=1 // pred_check_branch
      %10 = sbr.rel (0) target = $region5
    $region4: #{tpu_custom_call.1} parent=1 // pred_region
      %12 = vsyncadd [#allocation3], 0
      %s14 = sshll.u32 %s0, 4
      %s15 = int_to_ptr.hbm [resolvable:$true] %s14
      %s16 = sshll.u32 [#allocation2], 4
      %s17 = int_to_ptr.vmem [resolvable:$true] %s16
      %19 = dma.hbm_to_vmem [thread:$0]  %s15, 128, %s17, [#allocation3]
    $region5: #{tpu_custom_call.1} parent=1 // pred_fallthru
      _
    // Predicated region
    $region6: #{tpu_custom_call.1} parent=1 // pred_check
      _
    $region7: #{tpu_custom_call.1} parent=1 // pred_check_branch
      %21 = sbr.rel (0) target = $region9
    $region8: #{tpu_custom_call.1} parent=1 // pred_region
      %23 = vsyncadd [#allocation5], 0
      %s25 = sshll.u32 %s1, 4
      %s26 = int_to_ptr.hbm [resolvable:$true] %s25
      %s27 = sshll.u32 [#allocation4], 4
      %s28 = int_to_ptr.vmem [resolvable:$true] %s27
      %30 = dma.hbm_to_vmem [thread:$0]  %s26, 128, %s28, [#allocation5]
    $region9: #{tpu_custom_call.1} parent=1 // pred_fallthru
      _
    // Predicated region
    $region10: #{tpu_custom_call.1} parent=1 // pred_check
      _
    $region11: #{tpu_custom_call.1} parent=1 // pred_check_branch
      %32 = sbr.rel (0) target = $region13
    $region12: #{tpu_custom_call.1} parent=1 // pred_region
      %34 = dma.done [#allocation3], 128
    $region13: #{tpu_custom_call.1} parent=1 // pred_fallthru
      _
    // Predicated region
    $region14: #{tpu_custom_call.1} parent=1 // pred_check
      _
    $region15: #{tpu_custom_call.1} parent=1 // pred_check_branch
      %36 = sbr.rel (0) target = $region17
    $region16: #{tpu_custom_call.1} parent=1 // pred_region
      %38 = dma.done [#allocation5], 128
    $region17: #{tpu_custom_call.1} parent=1 // pred_fallthru
      _
    %v39 = vld [vmem:[#allocation2] sm:$0xff]
    %v40 = vld [vmem:[#allocation4] sm:$0xff]
    %vm41 = vcmask 261120
    %v42 = vsel %vm41, %v39, -inf
    %43 = vmax.xlane.f32.xlu0 %v42
    %v44 = vpop.xlane.xlu0 %43
    %v45 = vsub.f32 %v39, %v44
    %v46 = vmul.f32 %v45, 1.442695
    %v47 = vpow.pop %v46
    %v48 = vsel %vm41, %v47, 0.0
    %49 = vadd.xlane.f32.xlu0 %v48
    %v50 = vpop.xlane.xlu0 %49
    %v51 = vlog2.pop %v50
    %v52 = vmul.f32 %v51, 0.6931472
    %v53 = vsub.f32 %v45, %v52
    %v54 = vmul.f32 %v40, %v53
    %v55 = vsel %vm41, %v54, 0.0
    %56 = vadd.xlane.f32.xlu0 %v55
    %v57 = vpop.xlane.xlu0 %56
    %v58 = vsub.f32 0.0, %v57
    %v59 = vsub.f32 0.0, %v58
    %v60 = vmul.f32 %v59, 1.442695
    %v61 = vpow.pop %v60
    %v62 = vsub.f32 1.0, %v61
    %v63 = vmax.f32 %v62, 0.0
    %v64 = vmul.f32 %v63, %v63
    %v65 = vmul.f32 %v64, 0.25
    %v66 = vmul.f32 %v65, %v58
    %vm67 = vcmask 7168
    %68 = vst.msk [vmem:[%s2] sm:$0xff] %vm67, %v66
    // Predicated region
    $region18: #{tpu_custom_call.1} parent=1 // pred_check
      _
    $region19: #{tpu_custom_call.1} parent=1 // pred_check_branch
      %70 = sbr.rel (0) target = $region21
    $region20: #{tpu_custom_call.1} parent=1 // pred_region
      _
    $region21: #{tpu_custom_call.1} parent=1 // pred_fallthru
      _
    // Predicated region
    $region22: #{tpu_custom_call.1} parent=1 // pred_check
      _
    $region23: #{tpu_custom_call.1} parent=1 // pred_check_branch
      %72 = sbr.rel (0) target = $region25
    $region24: #{tpu_custom_call.1} parent=1 // pred_region
      _
    $region25: #{tpu_custom_call.1} parent=1 // pred_fallthru
      _
    %73 = vsyncpa [#allocation3], 1
    %74 = vsyncpa [#allocation5], 1

</llo_original>
